<compile_context>
chip_gen: v6e
topology: v6e:2x2x1
jax: 0.10.0
libtpu: 0.0.40
codegen_flags: <defaults>
</compile_context>

<pallas_src>
import jax
import jax.numpy as jnp
from jax.experimental import pallas as pl
from jax.experimental.pallas import tpu as pltpu


def agent_forward_kernel(x_ref, w1_ref, b1_ref, w2_ref, b2_ref,
                         probs_ref, embed_ref):
    x = x_ref[...]                                   # (TB, S)
    w1 = w1_ref[...]                                 # (S, Hp)
    b1 = b1_ref[...]                                 # (1, Hp)

    # fc1: x @ W1 + b1   (MXU matmul, f32 accumulate)
    h = jnp.dot(x, w1, preferred_element_type=jnp.float32) + b1   # (TB, Hp)
    embed_ref[...] = h.astype(embed_ref.dtype)       # embed = fc1 output (pre-ReLU)

    # ReLU
    hr = jnp.maximum(h, 0.0)

    # fc2: relu(h) @ W2 + b2  (padded logit columns carry a -1e30 bias)
    logits = jnp.dot(hr, w2_ref[...], preferred_element_type=jnp.float32) + b2_ref[...]

    # softmax over dim=1 (last axis), numerically stable; padded columns
    # underflow to exactly 0 so real columns still sum to 1.
    m = jnp.max(logits, axis=-1, keepdims=True)
    e = jnp.exp(logits - m)
    denom = jnp.sum(e, axis=-1, keepdims=True)
    # approx=False keeps exact 1e-5 agreement (approx=True would need renorm).
    probs_ref[...] = (e * pl.reciprocal(denom, approx=False)).astype(probs_ref.dtype)


def _round_up(n, m):
    return ((n + m - 1) // m) * m


def agent_forward(x, w1, b1, w2, b2, *, block_b=1024):
    """x: (B, S); w1: (S, H); b1: (H,); w2: (H, A); b2: (A,).

    Returns (probs (B, A), embed (B, H)) exactly like Agent.forward.
    """
    B, S = x.shape
    H = w1.shape[1]
    A = w2.shape[1]

    # Lane-dense padding of the feature (lane) dims of both outputs.
    H_pad = _round_up(H, 128)
    A_pad = _round_up(A, 128)

    # Batch tile: multiple of 8 sublanes, capped at block_b rows.
    TB = min(block_b, _round_up(B, 8))
    B_pad = _round_up(B, TB)

    xp = jnp.pad(x, ((0, B_pad - B), (0, 0)))
    w1p = jnp.pad(w1, ((0, 0), (0, H_pad - H)))                 # zero cols -> embed pad = 0
    b1p = jnp.pad(b1, (0, H_pad - H)).reshape(1, H_pad)
    w2p = jnp.pad(w2, ((0, H_pad - H), (0, A_pad - A)))         # zero rows/cols
    b2p = jnp.pad(b2, (0, A_pad - A),
                  constant_values=-1e30).reshape(1, A_pad)      # padded logits -> -1e30

    grid = (B_pad // TB,)

    probs_p, embed_p = pl.pallas_call(
        agent_forward_kernel,
        out_shape=(
            jax.ShapeDtypeStruct((B_pad, A_pad), jnp.float32),
            jax.ShapeDtypeStruct((B_pad, H_pad), jnp.float32),
        ),
        grid=grid,
        in_specs=[
            pl.BlockSpec((TB, S), lambda i: (i, 0)),        # x: tiled over batch
            pl.BlockSpec((S, H_pad), lambda i: (0, 0)),     # weights resident
            pl.BlockSpec((1, H_pad), lambda i: (0, 0)),
            pl.BlockSpec((H_pad, A_pad), lambda i: (0, 0)),
            pl.BlockSpec((1, A_pad), lambda i: (0, 0)),
        ],
        out_specs=(
            pl.BlockSpec((TB, A_pad), lambda i: (i, 0)),
            pl.BlockSpec((TB, H_pad), lambda i: (i, 0)),
        ),
        compiler_params=pltpu.CompilerParams(
            dimension_semantics=("parallel",)),              # v7x: shard batch over both TCs
    )(xp, w1p, b1p, w2p, b2p)

    # Slice away batch/lane padding in the wrapper.
    return probs_p[:B, :A], embed_p[:B, :H]


def init_agent_params(key, s_size, a_size, h_size=30):
    """Deterministic init mimicking nn.Linear default (uniform(-1/sqrt(fan_in), 1/sqrt(fan_in)))."""
    k1, k2, k3, k4 = jax.random.split(key, 4)
    lim1 = 1.0 / jnp.sqrt(jnp.float32(s_size))
    lim2 = 1.0 / jnp.sqrt(jnp.float32(h_size))
    # stored transposed: (in, out)
    w1 = jax.random.uniform(k1, (s_size, h_size), jnp.float32, -lim1, lim1)
    b1 = jax.random.uniform(k2, (h_size,), jnp.float32, -lim1, lim1)
    w2 = jax.random.uniform(k3, (h_size, a_size), jnp.float32, -lim2, lim2)
    b2 = jax.random.uniform(k4, (a_size,), jnp.float32, -lim2, lim2)
    return w1, b1, w2, b2


if __name__ == "__main__":
    # Small shapes consistent with the module: state vector -> action probs.
    batch = 2
    s_size = 16     # state size
    a_size = 8      # action size
    h_size = 30     # module default hidden size (padding handles non-aligned H)

    key = jax.random.PRNGKey(0)
    kx, kp = jax.random.split(key)
    x = jax.random.normal(kx, (batch, s_size), jnp.float32)
    w1, b1, w2, b2 = init_agent_params(kp, s_size, a_size, h_size)

    probs, embed = agent_forward(x, w1, b1, w2, b2)
    probs, embed = jax.block_until_ready((probs, embed))

    # Pure-JAX reference check.
    h_ref = x @ w1 + b1
    logits_ref = jnp.maximum(h_ref, 0.0) @ w2 + b2
    probs_ref = jax.nn.softmax(logits_ref, axis=1)
    assert probs.shape == (batch, a_size), "probs shape mismatch"
    assert embed.shape == (batch, h_size), "embed shape mismatch"
    assert jnp.allclose(probs, probs_ref, atol=1e-5), "probs mismatch"
    assert jnp.allclose(embed, h_ref, atol=1e-5), "embed mismatch"
    assert jnp.allclose(jnp.sum(probs, axis=1), 1.0, atol=1e-5), "softmax rows must sum to 1"

    print("KERNEL_OK")
</pallas_src>

<mosaic_0001>
module attributes {stable_mosaic.version = 11 : i64} {
  func.func @agent_forward_kernel(%arg0: i32, %arg1: memref<8x16xf32, #tpu.memory_space<vmem>>, %arg2: memref<16x128xf32, #tpu.memory_space<vmem>>, %arg3: memref<1x128xf32, #tpu.memory_space<vmem>>, %arg4: memref<128x128xf32, #tpu.memory_space<vmem>>, %arg5: memref<1x128xf32, #tpu.memory_space<vmem>>, %arg6: memref<8x128xf32, #tpu.memory_space<vmem>>, %arg7: memref<8x128xf32, #tpu.memory_space<vmem>>) attributes {dimension_semantics = [#tpu.dimension_semantics<parallel>], iteration_bounds = array<i64: 1>, scalar_prefetch = 0 : i64, scratch_operands = 0 : i64, tpu.core_type = #tpu.core_type<tc>, window_params = [{transform_indices = @transform_0, window_bounds = array<i64: 8, 16>}, {pipeline_mode = #tpu.pipeline_mode<synchronous>, transform_indices = @transform_1, window_bounds = array<i64: 16, 128>}, {pipeline_mode = #tpu.pipeline_mode<synchronous>, transform_indices = @transform_2, window_bounds = array<i64: 1, 128>}, {pipeline_mode = #tpu.pipeline_mode<synchronous>, transform_indices = @transform_3, window_bounds = array<i64: 128, 128>}, {pipeline_mode = #tpu.pipeline_mode<synchronous>, transform_indices = @transform_4, window_bounds = array<i64: 1, 128>}, {transform_indices = @transform_5, window_bounds = array<i64: 8, 128>}, {transform_indices = @transform_6, window_bounds = array<i64: 8, 128>}]} {
    %c0 = arith.constant 0 : index
    %c0_0 = arith.constant 0 : index
    %0 = vector.load %arg1[%c0, %c0_0] : memref<8x16xf32, #tpu.memory_space<vmem>>, vector<8x16xf32>
    %c0_1 = arith.constant 0 : index
    %c0_2 = arith.constant 0 : index
    %1 = vector.load %arg2[%c0_1, %c0_2] : memref<16x128xf32, #tpu.memory_space<vmem>>, vector<16x128xf32>
    %c0_3 = arith.constant 0 : index
    %c0_4 = arith.constant 0 : index
    %2 = vector.load %arg3[%c0_3, %c0_4] : memref<1x128xf32, #tpu.memory_space<vmem>>, vector<1x128xf32>
    %cst = arith.constant dense<0.000000e+00> : vector<8x128xf32>
    %3 = tpu.matmul %0, %1, %cst {dimension_numbers = #tpu.dot_dimension_numbers<[1], [0], [0], [1], [0, 0, 1, 1], [], []>} : vector<8x16xf32>, vector<16x128xf32>, vector<8x128xf32> -> vector<8x128xf32>
    %4 = vector.broadcast %2 : vector<1x128xf32> to vector<8x128xf32>
    %5 = arith.addf %3, %4 : vector<8x128xf32>
    %c0_5 = arith.constant 0 : index
    %c0_6 = arith.constant 0 : index
    %6 = vector.load %arg7[%c0_5, %c0_6] : memref<8x128xf32, #tpu.memory_space<vmem>>, vector<8x128xf32>
    tpu.vector_store %arg7[%c0_5, %c0_6], %5 {strides = array<i32>} : memref<8x128xf32, #tpu.memory_space<vmem>>, vector<8x128xf32>,
    %cst_7 = arith.constant 0.000000e+00 : f32
    %7 = vector.broadcast %cst_7 : f32 to vector<8x128xf32>
    %8 = arith.maximumf %5, %7 : vector<8x128xf32>
    %c0_8 = arith.constant 0 : index
    %c0_9 = arith.constant 0 : index
    %9 = vector.load %arg4[%c0_8, %c0_9] : memref<128x128xf32, #tpu.memory_space<vmem>>, vector<128x128xf32>
    %cst_10 = arith.constant dense<0.000000e+00> : vector<8x128xf32>
    %10 = tpu.matmul %8, %9, %cst_10 {dimension_numbers = #tpu.dot_dimension_numbers<[1], [0], [0], [1], [0, 0, 1, 1], [], []>} : vector<8x128xf32>, vector<128x128xf32>, vector<8x128xf32> -> vector<8x128xf32>
    %c0_11 = arith.constant 0 : index
    %c0_12 = arith.constant 0 : index
    %11 = vector.load %arg5[%c0_11, %c0_12] : memref<1x128xf32, #tpu.memory_space<vmem>>, vector<1x128xf32>
    %12 = vector.broadcast %11 : vector<1x128xf32> to vector<8x128xf32>
    %13 = arith.addf %10, %12 : vector<8x128xf32>
    %cst_13 = arith.constant dense<0xFF800000> : vector<8xf32>
    %14 = vector.multi_reduction <maximumf>, %13, %cst_13 [1] : vector<8x128xf32> to vector<8xf32>
    %15 = vector.shape_cast %14 : vector<8xf32> to vector<8x1xf32>
    %16 = vector.broadcast %15 : vector<8x1xf32> to vector<8x128xf32>
    %17 = arith.subf %13, %16 : vector<8x128xf32>
    %18 = math.exp %17 : vector<8x128xf32>
    %cst_14 = arith.constant dense<0.000000e+00> : vector<8xf32>
    %19 = vector.multi_reduction <add>, %18, %cst_14 [1] : vector<8x128xf32> to vector<8xf32>
    %20 = vector.shape_cast %19 : vector<8xf32> to vector<8x1xf32>
    %21 = tpu.reciprocal %20 : vector<8x1xf32> -> vector<8x1xf32>
    %22 = vector.broadcast %21 : vector<8x1xf32> to vector<8x128xf32>
    %23 = arith.mulf %18, %22 : vector<8x128xf32>
    %c0_15 = arith.constant 0 : index
    %c0_16 = arith.constant 0 : index
    %24 = vector.load %arg6[%c0_15, %c0_16] : memref<8x128xf32, #tpu.memory_space<vmem>>, vector<8x128xf32>
    tpu.vector_store %arg6[%c0_15, %c0_16], %23 {strides = array<i32>} : memref<8x128xf32, #tpu.memory_space<vmem>>, vector<8x128xf32>,
    return
  }
  func.func @transform_0(%arg0: i32) -> (i32, i32) {
    %c0_i32 = arith.constant 0 : i32
    %c0_i32_0 = arith.constant 0 : i32
    return %arg0, %c0_i32 : i32, i32
  }
  func.func @transform_1(%arg0: i32) -> (i32, i32) {
    %c0_i32 = arith.constant 0 : i32
    %c0_i32_0 = arith.constant 0 : i32
    %c0_i32_1 = arith.constant 0 : i32
    return %c0_i32, %c0_i32_0 : i32, i32
  }
  func.func @transform_2(%arg0: i32) -> (i32, i32) {
    %c0_i32 = arith.constant 0 : i32
    %c0_i32_0 = arith.constant 0 : i32
    %c0_i32_1 = arith.constant 0 : i32
    return %c0_i32, %c0_i32_0 : i32, i32
  }
  func.func @transform_3(%arg0: i32) -> (i32, i32) {
    %c0_i32 = arith.constant 0 : i32
    %c0_i32_0 = arith.constant 0 : i32
    %c0_i32_1 = arith.constant 0 : i32
    return %c0_i32, %c0_i32_0 : i32, i32
  }
  func.func @transform_4(%arg0: i32) -> (i32, i32) {
    %c0_i32 = arith.constant 0 : i32
    %c0_i32_0 = arith.constant 0 : i32
    %c0_i32_1 = arith.constant 0 : i32
    return %c0_i32, %c0_i32_0 : i32, i32
  }
  func.func @transform_5(%arg0: i32) -> (i32, i32) {
    %c0_i32 = arith.constant 0 : i32
    %c0_i32_0 = arith.constant 0 : i32
    return %arg0, %c0_i32 : i32, i32
  }
  func.func @transform_6(%arg0: i32) -> (i32, i32) {
    %c0_i32 = arith.constant 0 : i32
    %c0_i32_0 = arith.constant 0 : i32
    return %arg0, %c0_i32 : i32, i32
  }
}

</mosaic_0001>

<llo_original>
// kernel: tpu_custom_call.1
$region0: #{tpu_custom_call.1}
  #allocation0 [shape = 'u32[]', space=smem, size = 0x4, offset = 0x4, fixed_abs, tag = 'smem constant byte address 0x4 - core index']
  #allocation1 [shape = 'u32[144,128]{1,0:T(1,128)}', space=vmem, size = 0x12000, scoped, tag = 'internal scratch']
  %s0 = inlined_call_operand.hbm [shape: f32[8,16], index: 0, kind: input, shape index: {}]
  %s1 = inlined_call_operand.hbm [shape: f32[16,128], index: 1, kind: input, shape index: {}]
  %s2 = inlined_call_operand.vmem [shape: f32[1,128], index: 2, kind: input, shape index: {}]
  %s3 = inlined_call_operand.hbm [shape: f32[128,128], index: 3, kind: input, shape index: {}]
  %s4 = inlined_call_operand.vmem [shape: f32[1,128], index: 4, kind: input, shape index: {}]
  %s5 = inlined_call_operand.hbm [shape: f32[8,128], index: 5, kind: output, shape index: {0}]
  %s6 = inlined_call_operand.hbm [shape: f32[8,128], index: 6, kind: output, shape index: {1}]
  %7 = xla_tuple %s5, %s6
  %s8 = sld [smem:[#allocation0]]
  $region50: #{tpu_custom_call.1} parent=0
    _
  %s10 = ssub.s32 1, %s8
  %s11 = scalar_select 0, %s10, %s8
  $region1: #{tpu_custom_call.1} parent=0
    #allocation2 [shape = 'u8[4096]{0}', space=vmem, size = 0x1000, scoped, tag = 'input window, operand 0, single buffered']
    #allocation3 [shape = 's32[1]{0}', space=sflag, size = 0x4, scoped, tag = 'scoped memory for tpu_custom_call.1']
    #allocation4 [shape = 's32[1]{0}', space=sflag, size = 0x4, scoped, tag = 'scoped memory for tpu_custom_call.1']
    #allocation5 [shape = 'u8[8192]{0}', space=vmem, size = 0x2000, scoped, tag = 'input window, operand 1, single buffered']
    #allocation6 [shape = 's32[1]{0}', space=sflag, size = 0x4, scoped, tag = 'scoped memory for tpu_custom_call.1']
    #allocation7 [shape = 'u8[65536]{0}', space=vmem, size = 0x10000, scoped, tag = 'input window, operand 3, single buffered']
    #allocation8 [shape = 'u8[4096]{0}', space=vmem, size = 0x1000, scoped, tag = 'output window, operand 0, single buffered']
    #allocation9 [shape = 'u8[4096]{0}', space=vmem, size = 0x1000, scoped, tag = 'output window, operand 1, single buffered']
    #allocation10 [shape = 's32[1]{0}', space=sflag, size = 0x4, scoped, tag = 'scoped memory for tpu_custom_call.1']
    %12 = vsyncpa [#allocation3], 0
    %13 = vsyncpa [#allocation6], 0
    %14 = vsyncpa [#allocation4], 0
    %15 = vsyncpa [#allocation10], 0
    // Predicated region
    $region2: #{tpu_custom_call.1} parent=1 // pred_check
      _
    $region3: #{tpu_custom_call.1} parent=1 // pred_check_branch
      %17 = sbr.rel (0) target = $region5
    $region4: #{tpu_custom_call.1} parent=1 // pred_region
      %s19 = ssub.s32 128, 128
      %20 = vsyncadd [#allocation3], %s19
      %s22 = sshll.u32 [#allocation2], 4
      %s23 = int_to_ptr.vmem [resolvable:$true] %s22
      %25 = dma.hbm_to_vmem [thread:$0]  %s0, 128, %s23, [#allocation3]
    $region5: #{tpu_custom_call.1} parent=1 // pred_fallthru
      _
    // Predicated region
    $region6: #{tpu_custom_call.1} parent=1 // pred_check
      _
    $region7: #{tpu_custom_call.1} parent=1 // pred_check_branch
      %27 = sbr.rel (0) target = $region9
    $region8: #{tpu_custom_call.1} parent=1 // pred_region
      %s29 = ssub.s32 256, 256
      %30 = vsyncadd [#allocation6], %s29
      %s31 = sshll.u32 [#allocation5], 4
      %s32 = int_to_ptr.vmem [resolvable:$true] %s31
      %37 = dma.hbm_to_vmem [thread:$0]  %s1, 256, %s32, [#allocation6], 128, 128, 8
    $region9: #{tpu_custom_call.1} parent=1 // pred_fallthru
      _
    // Predicated region
    $region10: #{tpu_custom_call.1} parent=1 // pred_check
      _
    $region11: #{tpu_custom_call.1} parent=1 // pred_check_branch
      %39 = sbr.rel (0) target = $region13
    $region12: #{tpu_custom_call.1} parent=1 // pred_region
      _
    $region13: #{tpu_custom_call.1} parent=1 // pred_fallthru
      _
    // Predicated region
    $region14: #{tpu_custom_call.1} parent=1 // pred_check
      _
    $region15: #{tpu_custom_call.1} parent=1 // pred_check_branch
      %41 = sbr.rel (0) target = $region17
    $region16: #{tpu_custom_call.1} parent=1 // pred_region
      %s43 = ssub.s32 2048, 2048
      %44 = vsyncadd [#allocation6], %s43
      %s45 = sshll.u32 [#allocation7], 4
      %s46 = int_to_ptr.vmem [resolvable:$true] %s45
      %51 = dma.hbm_to_vmem [thread:$0]  %s3, 2048, %s46, [#allocation6], 128, 128, 8
    $region17: #{tpu_custom_call.1} parent=1 // pred_fallthru
      _
    // Predicated region
    $region18: #{tpu_custom_call.1} parent=1 // pred_check
      _
    $region19: #{tpu_custom_call.1} parent=1 // pred_check_branch
      %53 = sbr.rel (0) target = $region21
    $region20: #{tpu_custom_call.1} parent=1 // pred_region
      _
    $region21: #{tpu_custom_call.1} parent=1 // pred_fallthru
      _
    // Predicated region
    $region22: #{tpu_custom_call.1} parent=1 // pred_check
      _
    $region23: #{tpu_custom_call.1} parent=1 // pred_check_branch
      %55 = sbr.rel (0) target = $region25
    $region24: #{tpu_custom_call.1} parent=1 // pred_region
      %56 = dma.done [#allocation3], 128
    $region25: #{tpu_custom_call.1} parent=1 // pred_fallthru
      _
    // Predicated region
    $region26: #{tpu_custom_call.1} parent=1 // pred_check
      _
    $region27: #{tpu_custom_call.1} parent=1 // pred_check_branch
      %58 = sbr.rel (0) target = $region29
    $region28: #{tpu_custom_call.1} parent=1 // pred_region
      %59 = dma.done [#allocation6], 256
    $region29: #{tpu_custom_call.1} parent=1 // pred_fallthru
      _
    // Predicated region
    $region30: #{tpu_custom_call.1} parent=1 // pred_check
      _
    $region31: #{tpu_custom_call.1} parent=1 // pred_check_branch
      %61 = sbr.rel (0) target = $region33
    $region32: #{tpu_custom_call.1} parent=1 // pred_region
      %62 = dma.done [#allocation6], 2048
    $region33: #{tpu_custom_call.1} parent=1 // pred_fallthru
      _
    %v63 = vld [vmem:[#allocation2] sm:$0xff]
    %v64 = vld [vmem:[#allocation5] sm:$0xff]
    %v65 = vld [vmem:[#allocation5 + $0x8] sm:$0xff]
    %v66 = vld [vmem:[%s2] sm:$0x1]
    %v68 = vlaneseq
    %v69 = vshrl.u32 %v68, 7
    %v70 = vsub.s32 0, %v69
    %v71 = vrot.slane %v66, %v70
    %vm73 = vcmask 130048
    %v75 = vsel %vm73, %v63, 0
    %77 = vmatprep.subr.mxu0 0.0
    %78 = vmatpush1.msra.mxu0 0.0
    %79 = vmatprep.subr.mxu0 0.0
    %80 = vmatpush1.msra.mxu0 0.0
    %81 = vmatprep.subr.mxu0 0.0
    %82 = vmatpush1.msra.mxu0 0.0
    %83 = vmatprep.subr.mxu0 0.0
    %84 = vmatpush1.msra.mxu0 0.0
    %85 = vmatprep.subr.mxu0 0.0
    %86 = vmatpush1.msra.mxu0 0.0
    %87 = vmatprep.subr.mxu0 0.0
    %88 = vmatpush1.msra.mxu0 0.0
    %89 = vmatprep.subr.mxu0 0.0
    %90 = vmatpush1.msra.mxu0 0.0
    %91 = vmatprep.subr.mxu0 0.0
    %92 = vmatpush1.msra.mxu0 0.0
    %93 = vmatprep.subr.mxu0 0.0
    %94 = vmatpush1.msra.mxu0 0.0
    %95 = vmatprep.subr.mxu0 0.0
    %96 = vmatpush1.msra.mxu0 0.0
    %97 = vmatprep.subr.mxu0 0.0
    %98 = vmatpush1.msra.mxu0 0.0
    %99 = vmatprep.subr.mxu0 0.0
    %100 = vmatpush1.msra.mxu0 0.0
    %101 = vmatprep.subr.mxu0 0.0
    %102 = vmatpush1.msra.mxu0 0.0
    %103 = vmatprep.subr.mxu0 0.0
    %104 = vmatpush1.msra.mxu0 0.0
    %105 = vmatprep.subr.mxu0 0.0
    %106 = vmatpush1.msra.mxu0 %v65
    %107 = vmatprep.subr.mxu0 0.0
    %108 = vmatpush1.msra.mxu0 %v64
    %109 = vmatprep.subr.mxu0 0.0
    %110 = vmatpush2.msra.mxu0 0.0
    %111 = vmatprep.subr.mxu0 0.0
    %112 = vmatpush2.msra.mxu0 0.0
    %113 = vmatprep.subr.mxu0 0.0
    %114 = vmatpush2.msra.mxu0 0.0
    %115 = vmatprep.subr.mxu0 0.0
    %116 = vmatpush2.msra.mxu0 0.0
    %117 = vmatprep.subr.mxu0 0.0
    %118 = vmatpush2.msra.mxu0 0.0
    %119 = vmatprep.subr.mxu0 0.0
    %120 = vmatpush2.msra.mxu0 0.0
    %121 = vmatprep.subr.mxu0 0.0
    %122 = vmatpush2.msra.mxu0 0.0
    %123 = vmatprep.subr.mxu0 0.0
    %124 = vmatpush2.msra.mxu0 0.0
    %125 = vmatprep.subr.mxu0 0.0
    %126 = vmatpush2.msra.mxu0 0.0
    %127 = vmatprep.subr.mxu0 0.0
    %128 = vmatpush2.msra.mxu0 0.0
    %129 = vmatprep.subr.mxu0 0.0
    %130 = vmatpush2.msra.mxu0 0.0
    %131 = vmatprep.subr.mxu0 0.0
    %132 = vmatpush2.msra.mxu0 0.0
    %133 = vmatprep.subr.mxu0 0.0
    %134 = vmatpush2.msra.mxu0 0.0
    %135 = vmatprep.subr.mxu0 0.0
    %136 = vmatpush2.msra.mxu0 0.0
    %137 = vmatprep.subr.mxu0 0.0
    %138 = vmatpush2.msra.mxu0 0.0
    %139 = vmatprep.subr.mxu0 0.0
    %140 = vmatpush2.msra.mxu0 0.0
    %141 = vmatprep.mubr.f32.mxu0 0.0
    %142 = vmatmul.mubr.f32.gmra.mxu0 %v75
    %v143 = vpop.f32.mrf.mxu0
    %v144 = vadd.f32 %v71, %v143
    %v145 = vpop.f32.mrf.mxu0
    %146 = vdwg.mxu0
    %147 = vst [vmem:[#allocation9] sm:$0xff] %v144
    %v148 = vmax.f32 %v144, 0.0
    %v149 = vld [vmem:[#allocation7] sm:$0xff]
    %v150 = vld [vmem:[#allocation7 + $0x8] sm:$0xff]
    %v151 = vld [vmem:[#allocation7 + $0x10] sm:$0xff]
    %v152 = vld [vmem:[#allocation7 + $0x18] sm:$0xff]
    %v153 = vld [vmem:[#allocation7 + $0x20] sm:$0xff]
    %v154 = vld [vmem:[#allocation7 + $0x28] sm:$0xff]
    %v155 = vld [vmem:[#allocation7 + $0x30] sm:$0xff]
    %v156 = vld [vmem:[#allocation7 + $0x38] sm:$0xff]
    %v157 = vld [vmem:[#allocation7 + $0x40] sm:$0xff]
    %v158 = vld [vmem:[#allocation7 + $0x48] sm:$0xff]
    %v159 = vld [vmem:[#allocation7 + $0x50] sm:$0xff]
    %v160 = vld [vmem:[#allocation7 + $0x58] sm:$0xff]
    %v161 = vld [vmem:[#allocation7 + $0x60] sm:$0xff]
    %v162 = vld [vmem:[#allocation7 + $0x68] sm:$0xff]
    %v163 = vld [vmem:[#allocation7 + $0x70] sm:$0xff]
    %v164 = vld [vmem:[#allocation7 + $0x78] sm:$0xff]
    %v165 = vld [vmem:[%s4] sm:$0x1]
    %v167 = vlaneseq
    %v168 = vshrl.u32 %v167, 7
    %v169 = vsub.s32 0, %v168
    %v170 = vrot.slane %v165, %v169
    %172 = vmatprep.subr.mxu0 0.0
    %173 = vmatpush1.msra.mxu0 %v164
    %174 = vmatprep.subr.mxu0 0.0
    %175 = vmatpush1.msra.mxu0 %v163
    %176 = vmatprep.subr.mxu0 0.0
    %177 = vmatpush1.msra.mxu0 %v162
    %178 = vmatprep.subr.mxu0 0.0
    %179 = vmatpush1.msra.mxu0 %v161
    %180 = vmatprep.subr.mxu0 0.0
    %181 = vmatpush1.msra.mxu0 %v160
    %182 = vmatprep.subr.mxu0 0.0
    %183 = vmatpush1.msra.mxu0 %v159
    %184 = vmatprep.subr.mxu0 0.0
    %185 = vmatpush1.msra.mxu0 %v158
    %186 = vmatprep.subr.mxu0 0.0
    %187 = vmatpush1.msra.mxu0 %v157
    %188 = vmatprep.subr.mxu0 0.0
    %189 = vmatpush1.msra.mxu0 %v156
    %190 = vmatprep.subr.mxu0 0.0
    %191 = vmatpush1.msra.mxu0 %v155
    %192 = vmatprep.subr.mxu0 0.0
    %193 = vmatpush1.msra.mxu0 %v154
    %194 = vmatprep.subr.mxu0 0.0
    %195 = vmatpush1.msra.mxu0 %v153
    %196 = vmatprep.subr.mxu0 0.0
    %197 = vmatpush1.msra.mxu0 %v152
    %198 = vmatprep.subr.mxu0 0.0
    %199 = vmatpush1.msra.mxu0 %v151
    %200 = vmatprep.subr.mxu0 0.0
    %201 = vmatpush1.msra.mxu0 %v150
    %202 = vmatprep.subr.mxu0 0.0
    %203 = vmatpush1.msra.mxu0 %v149
    %204 = vmatprep.subr.mxu0 0.0
    %205 = vmatpush2.msra.mxu0 0.0
    %206 = vmatprep.subr.mxu0 0.0
    %207 = vmatpush2.msra.mxu0 0.0
    %208 = vmatprep.subr.mxu0 0.0
    %209 = vmatpush2.msra.mxu0 0.0
    %210 = vmatprep.subr.mxu0 0.0
    %211 = vmatpush2.msra.mxu0 0.0
    %212 = vmatprep.subr.mxu0 0.0
    %213 = vmatpush2.msra.mxu0 0.0
    %214 = vmatprep.subr.mxu0 0.0
    %215 = vmatpush2.msra.mxu0 0.0
    %216 = vmatprep.subr.mxu0 0.0
    %217 = vmatpush2.msra.mxu0 0.0
    %218 = vmatprep.subr.mxu0 0.0
    %219 = vmatpush2.msra.mxu0 0.0
    %220 = vmatprep.subr.mxu0 0.0
    %221 = vmatpush2.msra.mxu0 0.0
    %222 = vmatprep.subr.mxu0 0.0
    %223 = vmatpush2.msra.mxu0 0.0
    %224 = vmatprep.subr.mxu0 0.0
    %225 = vmatpush2.msra.mxu0 0.0
    %226 = vmatprep.subr.mxu0 0.0
    %227 = vmatpush2.msra.mxu0 0.0
    %228 = vmatprep.subr.mxu0 0.0
    %229 = vmatpush2.msra.mxu0 0.0
    %230 = vmatprep.subr.mxu0 0.0
    %231 = vmatpush2.msra.mxu0 0.0
    %232 = vmatprep.subr.mxu0 0.0
    %233 = vmatpush2.msra.mxu0 0.0
    %234 = vmatprep.subr.mxu0 0.0
    %235 = vmatpush2.msra.mxu0 0.0
    %236 = vmatprep.mubr.f32.mxu0 0.0
    %237 = vmatmul.mubr.f32.gmra.mxu0 %v148
    %v238 = vpop.f32.mrf.mxu0
    %v239 = vadd.f32 %v170, %v238
    %v240 = vpop.f32.mrf.mxu0
    %241 = vdwg.mxu0
    %242 = vmax.xlane.f32.xlu0 %v239
    %v243 = vpop.xlane.xlu0 %242
    %v244 = vsub.f32 %v239, %v243
    %v245 = vmul.f32 %v244, 1.442695
    %v246 = vpow.pop %v245
    %247 = vadd.xlane.f32.xlu0 %v246
    %v248 = vpop.xlane.xlu0 %247
    %v249 = vrcp.pop %v248
    %v250 = vmul.f32 %v246, %v249
    %251 = vst [vmem:[#allocation8] sm:$0xff] %v250
    // Predicated region
    $region34: #{tpu_custom_call.1} parent=1 // pred_check
      _
    $region35: #{tpu_custom_call.1} parent=1 // pred_check_branch
      %253 = sbr.rel (0) target = $region37
    $region36: #{tpu_custom_call.1} parent=1 // pred_region
      %s255 = ssub.s32 128, 128
      %256 = vsyncadd [#allocation4], %s255
      %s258 = sshll.u32 [#allocation8], 4
      %s259 = int_to_ptr.vmem [resolvable:$true] %s258
      %261 = dma.vmem_to_hbm [thread:$0]  %s259, 128, %s5, [#allocation4]
    $region37: #{tpu_custom_call.1} parent=1 // pred_fallthru
      _
    // Predicated region
    $region38: #{tpu_custom_call.1} parent=1 // pred_check
      _
    $region39: #{tpu_custom_call.1} parent=1 // pred_check_branch
      %263 = sbr.rel (0) target = $region41
    $region40: #{tpu_custom_call.1} parent=1 // pred_region
      %s265 = ssub.s32 128, 128
      %266 = vsyncadd [#allocation10], %s265
      %s268 = sshll.u32 [#allocation9], 4
      %s269 = int_to_ptr.vmem [resolvable:$true] %s268
      %271 = dma.vmem_to_hbm [thread:$0]  %s269, 128, %s6, [#allocation10]
    $region41: #{tpu_custom_call.1} parent=1 // pred_fallthru
      _
    // Predicated region
    $region42: #{tpu_custom_call.1} parent=1 // pred_check
      _
    $region43: #{tpu_custom_call.1} parent=1 // pred_check_branch
      %273 = sbr.rel (0) target = $region45
    $region44: #{tpu_custom_call.1} parent=1 // pred_region
      %274 = dma.done [#allocation4], 128
    $region45: #{tpu_custom_call.1} parent=1 // pred_fallthru
      _
    // Predicated region
    $region46: #{tpu_custom_call.1} parent=1 // pred_check
      _
    $region47: #{tpu_custom_call.1} parent=1 // pred_check_branch
      %276 = sbr.rel (0) target = $region49
    $region48: #{tpu_custom_call.1} parent=1 // pred_region
      %277 = dma.done [#allocation10], 128
    $region49: #{tpu_custom_call.1} parent=1 // pred_fallthru
      _
    %278 = vsyncpa [#allocation3], 1
    %279 = vsyncpa [#allocation6], 1
    %280 = vsyncpa [#allocation4], 1
    %281 = vsyncpa [#allocation10], 1

</llo_original>
